<compile_context>
chip_gen: v5e
topology: v5e:2x2
jax: 0.10.0
libtpu: 0.0.40
codegen_flags: <defaults>
</compile_context>

<pallas_src>
import jax
import jax.numpy as jnp
from jax.experimental import pallas as pl
from jax.experimental.pallas import tpu as pltpu

_LANE = 128
_NEG_BIG = -1e30   # bias for padded gate columns -> exp() underflows to 0


def _round_up(n, m):
    return ((n + m - 1) // m) * m


def _cdiv(a, b):
    return (a + b - 1) // b


def _make_kernel(Ep, E, H2, use_proj):
    """Build the kernel body for static layout params."""

    def kernel(x_ref, wf_ref, bf_ref, w2_ref, b2_ref, sel_ref, *rest):
        # x_ref:   (tB, D)            batch tile (mm_dtype)
        # wf_ref:  (D, Ep + E*H1)     [gate | fused layer-1] weights (mm_dtype)
        # bf_ref:  (1, Ep + E*H1)     [gate bias (-1e30 pad) | layer-1 bias] (f32)
        # w2_ref:  (E*H1, EH2p)       block-diagonal layer-2 weights (mm_dtype)
        # b2_ref:  (1, EH2p)          fused layer-2 bias (f32)
        # sel_ref: (Ep, EH2p)         0/1 gate-expansion selector (f32)
        # rest:    [proj_ref (EH2p, H2p) f32,] out_ref (tB, out_w)
        if use_proj:
            proj_ref, out_ref = rest
        else:
            (out_ref,) = rest

        x = x_ref[...]

        # ---- ONE MXU push: gate logits + all experts layer 1 ----
        r = jnp.dot(x, wf_ref[...], preferred_element_type=jnp.float32) + bf_ref[...]
        logits = r[:, :Ep]                       # (tB, Ep); pad cols ~ -1e30
        h = jnp.maximum(r[:, Ep:], 0.0)          # (tB, E*H1)

        # ---- stable softmax over Ep columns (pad cols -> 0); EUP reciprocal ----
        logits = logits - jnp.max(logits, axis=-1, keepdims=True)
        e_l = jnp.exp(logits)
        gate = e_l * pl.reciprocal(jnp.sum(e_l, axis=-1, keepdims=True), approx=True)

        # Lane-broadcast gate to one weight per output column (f32 selector).
        g_exp = jnp.dot(gate, sel_ref[...], preferred_element_type=jnp.float32)

        # ---- all experts, layer 2, via block-diagonal weights ----
        y = jnp.dot(h.astype(w2_ref.dtype), w2_ref[...],
                    preferred_element_type=jnp.float32) + b2_ref[...]
        y = jnp.maximum(y, 0.0)                  # (tB, EH2p)

        gy = g_exp * y                           # gate-weighted expert outputs (f32)

        if use_proj:
            # H2 < 128: 0/1 projector compacts + sums experts, keeps store lane-dense.
            out = jnp.dot(gy, proj_ref[...], preferred_element_type=jnp.float32)
        else:
            # H2 % 128 == 0: sum experts on the VPU (lane-aligned slices, no MXU push).
            out = gy[:, 0:H2]
            for e in range(1, E):
                out = out + gy[:, e * H2:(e + 1) * H2]

        out_ref[...] = out.astype(out_ref.dtype)

    return kernel


def _prep_packed_params(params, mm_dtype):
    """Wrapper-side layout work: fuse gate + expert stacks into lane-dense operands."""
    w1, b1 = params["w1"], params["b1"]
    w2, b2 = params["w2"], params["b2"]
    E, D, H1 = w1.shape
    H2 = w2.shape[2]
    EH1 = E * H1
    EH2 = E * H2
    Ep = _round_up(E, _LANE)                    # padded gate width (lane-aligned split)
    use_proj = (H2 % _LANE) != 0                # need lane-compaction projector?
    EH2p = EH2 if not use_proj else _round_up(EH2, _LANE)
    H2p = H2 if not use_proj else _round_up(H2, _LANE)

    # Gate fused into layer-1 weights (gate columns first, padded to 128).
    wg = params["wg"].astype(jnp.float32)                                  # (D, E)
    bg = params["bg"].astype(jnp.float32).reshape(1, E)
    wg_pad = jnp.zeros((D, Ep), jnp.float32).at[:, :E].set(wg)
    bg_pad = jnp.full((1, Ep), _NEG_BIG, jnp.float32).at[:, :E].set(bg)

    w1_flat = jnp.transpose(w1, (1, 0, 2)).reshape(D, EH1).astype(jnp.float32)
    b1_flat = b1.reshape(1, EH1).astype(jnp.float32)

    w_fused = jnp.concatenate([wg_pad, w1_flat], axis=1).astype(mm_dtype)  # (D, Ep+EH1)
    b_fused = jnp.concatenate([bg_pad, b1_flat], axis=1)                   # f32

    # Layer 2: block-diagonal weights; f32 0/1 selector (and projector if H2 < 128).
    w2_blk = jnp.zeros((EH1, EH2p), jnp.float32)
    b2_flat = jnp.zeros((1, EH2p), jnp.float32)
    sel = jnp.zeros((Ep, EH2p), jnp.float32)
    for e in range(E):  # trace-time loop; E is small
        w2_blk = w2_blk.at[e * H1:(e + 1) * H1, e * H2:(e + 1) * H2].set(
            w2[e].astype(jnp.float32))
        b2_flat = b2_flat.at[0, e * H2:(e + 1) * H2].set(b2[e].astype(jnp.float32))
        sel = sel.at[e, e * H2:(e + 1) * H2].set(1.0)

    packed = [w_fused, b_fused, w2_blk.astype(mm_dtype), b2_flat, sel]
    if use_proj:
        proj = jnp.zeros((EH2p, H2p), jnp.float32)
        eye_h2 = jnp.eye(H2, dtype=jnp.float32)
        for e in range(E):
            proj = proj.at[e * H2:(e + 1) * H2, :H2].set(eye_h2)
        packed.append(proj)

    dims = dict(E=E, D=D, H1=H1, H2=H2, Ep=Ep, EH1=EH1, EH2p=EH2p, H2p=H2p,
                use_proj=use_proj)
    return packed, dims


def moe_forward(x, params, *, tile_b=256, mm_dtype=jnp.bfloat16, out_dtype=None):
    """x: (B, D).  params: stacked weights (see init_params).

    mm_dtype:  dtype for MXU operands (bf16 default on all generations; v5e's
               MXU is also native bf16).  Accumulation / elementwise math stays f32.
    out_dtype: kernel output dtype (default x.dtype); bf16 halves HBM writeback.
    """
    B, D = x.shape
    if out_dtype is None:
        out_dtype = x.dtype

    packed, dims = _prep_packed_params(params, mm_dtype)
    E, H2, Ep, H2p = dims["E"], dims["H2"], dims["Ep"], dims["H2p"]
    use_proj = dims["use_proj"]
    out_w = H2p                                   # == H2 when H2 % 128 == 0

    # Batch tiling: sublane-packing aligned (8 for f32, 16 for bf16, 32 for int8),
    # one big tile per grid step; force >= 2 grid steps at large batch so the
    # "parallel" axis can shard across megacore / v7x's two TensorCores.
    sub = max(8, 32 // jnp.dtype(mm_dtype).itemsize)
    tb = min(_round_up(max(tile_b, sub), sub), _round_up(B, sub))
    B_pad = _round_up(B, tb)
    if B_pad // tb < 2 and B_pad >= 2 * 256:
        tb = _round_up(_cdiv(B_pad, 2), sub)
        B_pad = _round_up(B, tb)

    x_in = x.astype(mm_dtype)
    if B_pad != B:
        x_in = jnp.pad(x_in, ((0, B_pad - B), (0, 0)))

    grid = (B_pad // tb,)

    def full_spec(a):
        nd = a.ndim
        return pl.BlockSpec(a.shape, lambda i, _nd=nd: (0,) * _nd)

    in_specs = [pl.BlockSpec((tb, D), lambda i: (i, 0))] + [full_spec(a) for a in packed]

    # VMEM budget: only raise the scoped limit when the (double-buffered) working
    # set needs it.  Toy shapes never trigger this; for real v7x-scale configs
    # (E^2*H1*H2 weight growth) add an expert grid axis instead (see TODO above).
    weight_bytes = sum(int(a.size) * jnp.dtype(a.dtype).itemsize for a in packed)
    io_bytes = tb * D * jnp.dtype(mm_dtype).itemsize \
        + tb * out_w * jnp.dtype(out_dtype).itemsize
    interm_bytes = tb * (dims["Ep"] + dims["EH1"] + 3 * dims["EH2p"]) * 4
    est = 2 * (weight_bytes + io_bytes) + interm_bytes
    cp_kwargs = dict(dimension_semantics=("parallel",))
    if est > 32 * 1024 * 1024:
        cp_kwargs["vmem_limit_bytes"] = int(min(_round_up(est, 1 << 20) + (4 << 20),
                                                96 * 1024 * 1024))

    kernel = _make_kernel(Ep, E, H2, use_proj)

    out_pad = pl.pallas_call(
        kernel,
        out_shape=jax.ShapeDtypeStruct((B_pad, out_w), out_dtype),
        grid_spec=pltpu.PrefetchScalarGridSpec(
            num_scalar_prefetch=0,
            grid=grid,
            in_specs=in_specs,
            out_specs=pl.BlockSpec((tb, out_w), lambda i: (i, 0)),
        ),
        compiler_params=pltpu.CompilerParams(**cp_kwargs),
    )(x_in, *packed)

    return out_pad[:B, :H2]


def init_params(key, inp_dim, export_num, export_arch):
    """Deterministic synthetic parameters matching the PyTorch module shapes."""
    assert len(export_arch) == 2, "demo uses a 2-layer expert MLP"
    h1, h2 = export_arch
    keys = jax.random.split(key, 6)
    scale = 0.1
    return {
        "wg": scale * jax.random.normal(keys[0], (inp_dim, export_num), jnp.float32),
        "bg": scale * jax.random.normal(keys[1], (1, export_num), jnp.float32),
        "w1": scale * jax.random.normal(keys[2], (export_num, inp_dim, h1), jnp.float32),
        "b1": scale * jax.random.normal(keys[3], (export_num, h1), jnp.float32),
        "w2": scale * jax.random.normal(keys[4], (export_num, h1, h2), jnp.float32),
        "b2": scale * jax.random.normal(keys[5], (export_num, h2), jnp.float32),
    }


def moe_reference(x, params):
    """Pure-JAX reference mirroring the PyTorch forward."""
    gate = jax.nn.softmax(x @ params["wg"] + params["bg"], axis=-1)                # (B, E)
    h = jnp.maximum(jnp.einsum("bd,edh->beh", x, params["w1"]) + params["b1"][None], 0.0)
    o = jnp.maximum(jnp.einsum("beh,eho->beo", h, params["w2"]) + params["b2"][None], 0.0)
    return jnp.einsum("be,beo->bo", gate, o)                                        # (B, H2)


if __name__ == "__main__":
    key = jax.random.PRNGKey(0)

    # ---- Config 1: H2 < 128 -> projector (lane-compaction) path; B=20 exercises
    # batch padding.  inp_dim=32, export_num=4, export_arch=[32, 16].
    B, D = 20, 32
    export_num, export_arch = 4, [32, 16]
    kx, kp, kx2, kp2 = jax.random.split(key, 4)
    x = jax.random.normal(kx, (B, D), jnp.float32)
    params = init_params(kp, D, export_num, export_arch)
    ref = moe_reference(x, params)

    # f32 matmul operands: tight agreement (approx reciprocal ~1e-4 rel).
    out_f32 = jax.block_until_ready(moe_forward(x, params, mm_dtype=jnp.float32))
    assert out_f32.shape == (B, export_arch[-1])
    assert jnp.allclose(out_f32, ref, atol=2e-3, rtol=2e-3), "f32 mismatch vs reference"

    # Default path: bf16 MXU operands (all generations), f32 accumulation.
    out_bf16 = jax.block_until_ready(moe_forward(x, params))
    assert out_bf16.shape == (B, export_arch[-1])
    assert jnp.allclose(out_bf16, ref, atol=5e-2, rtol=5e-2), "bf16 mismatch vs reference"

    # ---- Config 2: H2 = 128 -> VPU expert-sum path (no projector matmul).
    B2, D2 = 40, 32
    export_num2, export_arch2 = 2, [64, 128]
    x2 = jax.random.normal(kx2, (B2, D2), jnp.float32)
    params2 = init_params(kp2, D2, export_num2, export_arch2)
    ref2 = moe_reference(x2, params2)
    out2 = jax.block_until_ready(moe_forward(x2, params2))
    assert out2.shape == (B2, export_arch2[-1])
    assert jnp.allclose(out2, ref2, atol=5e-2, rtol=5e-2), "bf16 (sum path) mismatch"

    print("KERNEL_OK")
</pallas_src>

<mosaic_0001>
module attributes {stable_mosaic.version = 11 : i64} {
  func.func @kernel(%arg0: i32, %arg1: memref<24x32xf32, #tpu.memory_space<vmem>>, %arg2: memref<32x256xf32, #tpu.memory_space<vmem>>, %arg3: memref<1x256xf32, #tpu.memory_space<vmem>>, %arg4: memref<128x128xf32, #tpu.memory_space<vmem>>, %arg5: memref<1x128xf32, #tpu.memory_space<vmem>>, %arg6: memref<128x128xf32, #tpu.memory_space<vmem>>, %arg7: memref<128x128xf32, #tpu.memory_space<vmem>>, %arg8: memref<24x128xf32, #tpu.memory_space<vmem>>) attributes {dimension_semantics = [#tpu.dimension_semantics<parallel>], iteration_bounds = array<i64: 1>, scalar_prefetch = 0 : i64, scratch_operands = 0 : i64, tpu.core_type = #tpu.core_type<tc>, window_params = [{transform_indices = @transform_0, window_bounds = array<i64: 24, 32>}, {pipeline_mode = #tpu.pipeline_mode<synchronous>, transform_indices = @transform_1, window_bounds = array<i64: 32, 256>}, {pipeline_mode = #tpu.pipeline_mode<synchronous>, transform_indices = @transform_2, window_bounds = array<i64: 1, 256>}, {pipeline_mode = #tpu.pipeline_mode<synchronous>, transform_indices = @transform_3, window_bounds = array<i64: 128, 128>}, {pipeline_mode = #tpu.pipeline_mode<synchronous>, transform_indices = @transform_4, window_bounds = array<i64: 1, 128>}, {pipeline_mode = #tpu.pipeline_mode<synchronous>, transform_indices = @transform_5, window_bounds = array<i64: 128, 128>}, {pipeline_mode = #tpu.pipeline_mode<synchronous>, transform_indices = @transform_6, window_bounds = array<i64: 128, 128>}, {transform_indices = @transform_7, window_bounds = array<i64: 24, 128>}]} {
    %c0 = arith.constant 0 : index
    %c0_0 = arith.constant 0 : index
    %0 = vector.load %arg1[%c0, %c0_0] : memref<24x32xf32, #tpu.memory_space<vmem>>, vector<24x32xf32>
    %c0_1 = arith.constant 0 : index
    %c0_2 = arith.constant 0 : index
    %1 = vector.load %arg2[%c0_1, %c0_2] : memref<32x256xf32, #tpu.memory_space<vmem>>, vector<32x256xf32>
    %cst = arith.constant dense<0.000000e+00> : vector<24x256xf32>
    %2 = tpu.matmul %0, %1, %cst {dimension_numbers = #tpu.dot_dimension_numbers<[1], [0], [0], [1], [0, 0, 1, 1], [], []>} : vector<24x32xf32>, vector<32x256xf32>, vector<24x256xf32> -> vector<24x256xf32>
    %c0_3 = arith.constant 0 : index
    %c0_4 = arith.constant 0 : index
    %3 = vector.load %arg3[%c0_3, %c0_4] : memref<1x256xf32, #tpu.memory_space<vmem>>, vector<1x256xf32>
    %4 = vector.broadcast %3 : vector<1x256xf32> to vector<24x256xf32>
    %5 = arith.addf %2, %4 : vector<24x256xf32>
    %6 = vector.extract_strided_slice %5 {offsets = [0, 0], sizes = [24, 128], strides = [1, 1]} : vector<24x256xf32> to vector<24x128xf32>
    %7 = vector.extract_strided_slice %5 {offsets = [0, 128], sizes = [24, 128], strides = [1, 1]} : vector<24x256xf32> to vector<24x128xf32>
    %cst_5 = arith.constant 0.000000e+00 : f32
    %8 = vector.broadcast %cst_5 : f32 to vector<24x128xf32>
    %9 = arith.maximumf %7, %8 : vector<24x128xf32>
    %cst_6 = arith.constant dense<0xFF800000> : vector<24xf32>
    %10 = vector.multi_reduction <maximumf>, %6, %cst_6 [1] : vector<24x128xf32> to vector<24xf32>
    %11 = vector.shape_cast %10 : vector<24xf32> to vector<24x1xf32>
    %12 = vector.broadcast %11 : vector<24x1xf32> to vector<24x128xf32>
    %13 = arith.subf %6, %12 : vector<24x128xf32>
    %14 = math.exp %13 : vector<24x128xf32>
    %cst_7 = arith.constant dense<0.000000e+00> : vector<24xf32>
    %15 = vector.multi_reduction <add>, %14, %cst_7 [1] : vector<24x128xf32> to vector<24xf32>
    %16 = vector.shape_cast %15 : vector<24xf32> to vector<24x1xf32>
    %17 = tpu.reciprocal %16 {approx = true} : vector<24x1xf32> -> vector<24x1xf32>
    %18 = vector.broadcast %17 : vector<24x1xf32> to vector<24x128xf32>
    %19 = arith.mulf %14, %18 : vector<24x128xf32>
    %c0_8 = arith.constant 0 : index
    %c0_9 = arith.constant 0 : index
    %20 = vector.load %arg6[%c0_8, %c0_9] : memref<128x128xf32, #tpu.memory_space<vmem>>, vector<128x128xf32>
    %cst_10 = arith.constant dense<0.000000e+00> : vector<24x128xf32>
    %21 = tpu.matmul %19, %20, %cst_10 {dimension_numbers = #tpu.dot_dimension_numbers<[1], [0], [0], [1], [0, 0, 1, 1], [], []>} : vector<24x128xf32>, vector<128x128xf32>, vector<24x128xf32> -> vector<24x128xf32>
    %c0_11 = arith.constant 0 : index
    %c0_12 = arith.constant 0 : index
    %22 = vector.load %arg4[%c0_11, %c0_12] : memref<128x128xf32, #tpu.memory_space<vmem>>, vector<128x128xf32>
    %cst_13 = arith.constant dense<0.000000e+00> : vector<24x128xf32>
    %23 = tpu.matmul %9, %22, %cst_13 {dimension_numbers = #tpu.dot_dimension_numbers<[1], [0], [0], [1], [0, 0, 1, 1], [], []>} : vector<24x128xf32>, vector<128x128xf32>, vector<24x128xf32> -> vector<24x128xf32>
    %c0_14 = arith.constant 0 : index
    %c0_15 = arith.constant 0 : index
    %24 = vector.load %arg5[%c0_14, %c0_15] : memref<1x128xf32, #tpu.memory_space<vmem>>, vector<1x128xf32>
    %25 = vector.broadcast %24 : vector<1x128xf32> to vector<24x128xf32>
    %26 = arith.addf %23, %25 : vector<24x128xf32>
    %cst_16 = arith.constant 0.000000e+00 : f32
    %27 = vector.broadcast %cst_16 : f32 to vector<24x128xf32>
    %28 = arith.maximumf %26, %27 : vector<24x128xf32>
    %29 = arith.mulf %21, %28 : vector<24x128xf32>
    %c0_17 = arith.constant 0 : index
    %c0_18 = arith.constant 0 : index
    %30 = vector.load %arg7[%c0_17, %c0_18] : memref<128x128xf32, #tpu.memory_space<vmem>>, vector<128x128xf32>
    %cst_19 = arith.constant dense<0.000000e+00> : vector<24x128xf32>
    %31 = tpu.matmul %29, %30, %cst_19 {dimension_numbers = #tpu.dot_dimension_numbers<[1], [0], [0], [1], [0, 0, 1, 1], [], []>} : vector<24x128xf32>, vector<128x128xf32>, vector<24x128xf32> -> vector<24x128xf32>
    %c0_20 = arith.constant 0 : index
    %c0_21 = arith.constant 0 : index
    %32 = vector.load %arg8[%c0_20, %c0_21] : memref<24x128xf32, #tpu.memory_space<vmem>>, vector<24x128xf32>
    tpu.vector_store %arg8[%c0_20, %c0_21], %31 {strides = array<i32>} : memref<24x128xf32, #tpu.memory_space<vmem>>, vector<24x128xf32>,
    return
  }
  func.func @transform_0(%arg0: i32) -> (i32, i32) {
    %c0_i32 = arith.constant 0 : i32
    %c0_i32_0 = arith.constant 0 : i32
    return %arg0, %c0_i32 : i32, i32
  }
  func.func @transform_1(%arg0: i32) -> (i32, i32) {
    %c0_i32 = arith.constant 0 : i32
    %c0_i32_0 = arith.constant 0 : i32
    %c0_i32_1 = arith.constant 0 : i32
    return %c0_i32, %c0_i32_0 : i32, i32
  }
  func.func @transform_2(%arg0: i32) -> (i32, i32) {
    %c0_i32 = arith.constant 0 : i32
    %c0_i32_0 = arith.constant 0 : i32
    %c0_i32_1 = arith.constant 0 : i32
    return %c0_i32, %c0_i32_0 : i32, i32
  }
  func.func @transform_3(%arg0: i32) -> (i32, i32) {
    %c0_i32 = arith.constant 0 : i32
    %c0_i32_0 = arith.constant 0 : i32
    %c0_i32_1 = arith.constant 0 : i32
    return %c0_i32, %c0_i32_0 : i32, i32
  }
  func.func @transform_4(%arg0: i32) -> (i32, i32) {
    %c0_i32 = arith.constant 0 : i32
    %c0_i32_0 = arith.constant 0 : i32
    %c0_i32_1 = arith.constant 0 : i32
    return %c0_i32, %c0_i32_0 : i32, i32
  }
  func.func @transform_5(%arg0: i32) -> (i32, i32) {
    %c0_i32 = arith.constant 0 : i32
    %c0_i32_0 = arith.constant 0 : i32
    %c0_i32_1 = arith.constant 0 : i32
    return %c0_i32, %c0_i32_0 : i32, i32
  }
  func.func @transform_6(%arg0: i32) -> (i32, i32) {
    %c0_i32 = arith.constant 0 : i32
    %c0_i32_0 = arith.constant 0 : i32
    %c0_i32_1 = arith.constant 0 : i32
    return %c0_i32, %c0_i32_0 : i32, i32
  }
  func.func @transform_7(%arg0: i32) -> (i32, i32) {
    %c0_i32 = arith.constant 0 : i32
    %c0_i32_0 = arith.constant 0 : i32
    return %arg0, %c0_i32 : i32, i32
  }
}

</mosaic_0001>

<llo_original>
// kernel: tpu_custom_call.1
$region0: #{tpu_custom_call.1}
  #allocation0 [shape = 'u32[]', space=smem, size = 0x4, offset = 0x4, fixed_abs, tag = 'smem constant byte address 0x4 - core index']
  #allocation1 [shape = 'u32[72,128]{1,0:T(1,128)}', space=vmem, size = 0x9000, scoped, tag = 'internal scratch']
  %s0 = inlined_call_operand.hbm [shape: f32[24,32], index: 0, kind: input, shape index: {}]
  %s1 = inlined_call_operand.hbm [shape: f32[32,256], index: 1, kind: input, shape index: {}]
  %s2 = inlined_call_operand.hbm [shape: f32[1,256], index: 2, kind: input, shape index: {}]
  %s3 = inlined_call_operand.hbm [shape: f32[128,128], index: 3, kind: input, shape index: {}]
  %s4 = inlined_call_operand.vmem [shape: f32[1,128], index: 4, kind: input, shape index: {}]
  %s5 = inlined_call_operand.hbm [shape: f32[128,128], index: 5, kind: input, shape index: {}]
  %s6 = inlined_call_operand.hbm [shape: f32[128,128], index: 6, kind: input, shape index: {}]
  %s7 = inlined_call_operand.hbm [shape: f32[24,128], index: 7, kind: output, shape index: {}]
  %s8 = sld [smem:[#allocation0]]
  $region62: #{tpu_custom_call.1} parent=0
    _
  %s10 = ssub.s32 1, %s8
  %s11 = scalar_select 0, %s10, %s8
  $region1: #{tpu_custom_call.1} parent=0
    #allocation2 [shape = 'u8[12288]{0}', space=vmem, size = 0x3000, scoped, tag = 'input window, operand 0, single buffered']
    #allocation3 [shape = 's32[1]{0}', space=sflag, size = 0x4, scoped, tag = 'scoped memory for tpu_custom_call.1']
    #allocation4 [shape = 's32[1]{0}', space=sflag, size = 0x4, scoped, tag = 'scoped memory for tpu_custom_call.1']
    #allocation5 [shape = 'u8[32768]{0}', space=vmem, size = 0x8000, scoped, tag = 'input window, operand 1, single buffered']
    #allocation6 [shape = 's32[1]{0}', space=sflag, size = 0x4, scoped, tag = 'scoped memory for tpu_custom_call.1']
    #allocation7 [shape = 'u8[1024]{0}', space=vmem, size = 0x400, scoped, tag = 'input window, operand 2, single buffered']
    #allocation8 [shape = 'u8[65536]{0}', space=vmem, size = 0x10000, scoped, tag = 'input window, operand 3, single buffered']
    #allocation9 [shape = 's32[1]{0}', space=sflag, size = 0x4, scoped, tag = 'scoped memory for tpu_custom_call.1']
    #allocation10 [shape = 'u8[65536]{0}', space=vmem, size = 0x10000, scoped, tag = 'input window, operand 5, single buffered']
    #allocation11 [shape = 'u8[65536]{0}', space=vmem, size = 0x10000, scoped, tag = 'input window, operand 6, single buffered']
    #allocation12 [shape = 's32[1]{0}', space=sflag, size = 0x4, scoped, tag = 'scoped memory for tpu_custom_call.1']
    #allocation13 [shape = 'u8[12288]{0}', space=vmem, size = 0x3000, scoped, tag = 'output window, operand 0, single buffered']
    %12 = vsyncpa [#allocation3], 0
    %13 = vsyncpa [#allocation6], 0
    %14 = vsyncpa [#allocation9], 0
    %15 = vsyncpa [#allocation12], 0
    %16 = vsyncpa [#allocation4], 0
    // Predicated region
    $region2: #{tpu_custom_call.1} parent=1 // pred_check
      _
    $region3: #{tpu_custom_call.1} parent=1 // pred_check_branch
      %18 = sbr.rel (0) target = $region5
    $region4: #{tpu_custom_call.1} parent=1 // pred_region
      %20 = vsyncadd [#allocation3], 0
      %s21 = sshll.u32 %s0, 4
      %s22 = int_to_ptr.hbm [resolvable:$true] %s21
      %s23 = sshll.u32 [#allocation2], 4
      %s24 = int_to_ptr.vmem [resolvable:$true] %s23
      %29 = dma.hbm_to_vmem [thread:$0]  %s22, 384, %s24, [#allocation3], 128, 128, 8
    $region5: #{tpu_custom_call.1} parent=1 // pred_fallthru
      _
    // Predicated region
    $region6: #{tpu_custom_call.1} parent=1 // pred_check
      _
    $region7: #{tpu_custom_call.1} parent=1 // pred_check_branch
      %31 = sbr.rel (0) target = $region9
    $region8: #{tpu_custom_call.1} parent=1 // pred_region
      %33 = vsyncadd [#allocation6], 0
      %s34 = sshll.u32 %s1, 4
      %s35 = int_to_ptr.hbm [resolvable:$true] %s34
      %s36 = sshll.u32 [#allocation5], 4
      %s37 = int_to_ptr.vmem [resolvable:$true] %s36
      %42 = dma.hbm_to_vmem [thread:$0]  %s35, 1024, %s37, [#allocation6], 256, 256, 16
    $region9: #{tpu_custom_call.1} parent=1 // pred_fallthru
      _
    // Predicated region
    $region10: #{tpu_custom_call.1} parent=1 // pred_check
      _
    $region11: #{tpu_custom_call.1} parent=1 // pred_check_branch
      %44 = sbr.rel (0) target = $region13
    $region12: #{tpu_custom_call.1} parent=1 // pred_region
      %46 = vsyncadd [#allocation6], 0
      %s48 = sshll.u32 %s2, 4
      %s49 = int_to_ptr.hbm [resolvable:$true] %s48
      %s50 = sshll.u32 [#allocation7], 4
      %s51 = int_to_ptr.vmem [resolvable:$true] %s50
      %53 = dma.hbm_to_vmem [thread:$0]  %s49, 32, %s51, [#allocation6]
    $region13: #{tpu_custom_call.1} parent=1 // pred_fallthru
      _
    // Predicated region
    $region14: #{tpu_custom_call.1} parent=1 // pred_check
      _
    $region15: #{tpu_custom_call.1} parent=1 // pred_check_branch
      %55 = sbr.rel (0) target = $region17
    $region16: #{tpu_custom_call.1} parent=1 // pred_region
      %57 = vsyncadd [#allocation9], 0
      %s58 = sshll.u32 %s3, 4
      %s59 = int_to_ptr.hbm [resolvable:$true] %s58
      %s60 = sshll.u32 [#allocation8], 4
      %s61 = int_to_ptr.vmem [resolvable:$true] %s60
      %66 = dma.hbm_to_vmem [thread:$0]  %s59, 2048, %s61, [#allocation9], 128, 128, 8
    $region17: #{tpu_custom_call.1} parent=1 // pred_fallthru
      _
    // Predicated region
    $region18: #{tpu_custom_call.1} parent=1 // pred_check
      _
    $region19: #{tpu_custom_call.1} parent=1 // pred_check_branch
      %68 = sbr.rel (0) target = $region21
    $region20: #{tpu_custom_call.1} parent=1 // pred_region
      _
    $region21: #{tpu_custom_call.1} parent=1 // pred_fallthru
      _
    // Predicated region
    $region22: #{tpu_custom_call.1} parent=1 // pred_check
      _
    $region23: #{tpu_custom_call.1} parent=1 // pred_check_branch
      %70 = sbr.rel (0) target = $region25
    $region24: #{tpu_custom_call.1} parent=1 // pred_region
      %72 = vsyncadd [#allocation9], 0
      %s73 = sshll.u32 %s5, 4
      %s74 = int_to_ptr.hbm [resolvable:$true] %s73
      %s75 = sshll.u32 [#allocation10], 4
      %s76 = int_to_ptr.vmem [resolvable:$true] %s75
      %81 = dma.hbm_to_vmem [thread:$0]  %s74, 2048, %s76, [#allocation9], 128, 128, 8
    $region25: #{tpu_custom_call.1} parent=1 // pred_fallthru
      _
    // Predicated region
    $region26: #{tpu_custom_call.1} parent=1 // pred_check
      _
    $region27: #{tpu_custom_call.1} parent=1 // pred_check_branch
      %83 = sbr.rel (0) target = $region29
    $region28: #{tpu_custom_call.1} parent=1 // pred_region
      %85 = vsyncadd [#allocation12], 0
      %s86 = sshll.u32 %s6, 4
      %s87 = int_to_ptr.hbm [resolvable:$true] %s86
      %s88 = sshll.u32 [#allocation11], 4
      %s89 = int_to_ptr.vmem [resolvable:$true] %s88
      %94 = dma.hbm_to_vmem [thread:$0]  %s87, 2048, %s89, [#allocation12], 128, 128, 8
    $region29: #{tpu_custom_call.1} parent=1 // pred_fallthru
      _
    // Predicated region
    $region30: #{tpu_custom_call.1} parent=1 // pred_check
      _
    $region31: #{tpu_custom_call.1} parent=1 // pred_check_branch
      %96 = sbr.rel (0) target = $region33
    $region32: #{tpu_custom_call.1} parent=1 // pred_region
      %98 = dma.done [#allocation3], 384
    $region33: #{tpu_custom_call.1} parent=1 // pred_fallthru
      _
    // Predicated region
    $region34: #{tpu_custom_call.1} parent=1 // pred_check
      _
    $region35: #{tpu_custom_call.1} parent=1 // pred_check_branch
      %100 = sbr.rel (0) target = $region37
    $region36: #{tpu_custom_call.1} parent=1 // pred_region
      %102 = dma.done [#allocation6], 1024
    $region37: #{tpu_custom_call.1} parent=1 // pred_fallthru
      _
    // Predicated region
    $region38: #{tpu_custom_call.1} parent=1 // pred_check
      _
    $region39: #{tpu_custom_call.1} parent=1 // pred_check_branch
      %104 = sbr.rel (0) target = $region41
    $region40: #{tpu_custom_call.1} parent=1 // pred_region
      %106 = dma.done [#allocation6], 32
    $region41: #{tpu_custom_call.1} parent=1 // pred_fallthru
      _
    // Predicated region
    $region42: #{tpu_custom_call.1} parent=1 // pred_check
      _
    $region43: #{tpu_custom_call.1} parent=1 // pred_check_branch
      %108 = sbr.rel (0) target = $region45
    $region44: #{tpu_custom_call.1} parent=1 // pred_region
      %110 = dma.done [#allocation9], 2048
    $region45: #{tpu_custom_call.1} parent=1 // pred_fallthru
      _
    // Predicated region
    $region46: #{tpu_custom_call.1} parent=1 // pred_check
      _
    $region47: #{tpu_custom_call.1} parent=1 // pred_check_branch
      %112 = sbr.rel (0) target = $region49
    $region48: #{tpu_custom_call.1} parent=1 // pred_region
      %114 = dma.done [#allocation9], 2048
    $region49: #{tpu_custom_call.1} parent=1 // pred_fallthru
      _
    // Predicated region
    $region50: #{tpu_custom_call.1} parent=1 // pred_check
      _
    $region51: #{tpu_custom_call.1} parent=1 // pred_check_branch
      %116 = sbr.rel (0) target = $region53
    $region52: #{tpu_custom_call.1} parent=1 // pred_region
      %118 = dma.done [#allocation12], 2048
    $region53: #{tpu_custom_call.1} parent=1 // pred_fallthru
      _
    %v119 = vld [vmem:[#allocation2] sm:$0xff]
    %v120 = vld [vmem:[#allocation2 + $0x8] sm:$0xff]
    %v121 = vld [vmem:[#allocation2 + $0x10] sm:$0xff]
    %v122 = vld [vmem:[#allocation5] sm:$0xff]
    %v123 = vld [vmem:[#allocation5 + $0x8] sm:$0xff]
    %v124 = vld [vmem:[#allocation5 + $0x10] sm:$0xff]
    %v125 = vld [vmem:[#allocation5 + $0x18] sm:$0xff]
    %v126 = vld [vmem:[#allocation5 + $0x20] sm:$0xff]
    %v127 = vld [vmem:[#allocation5 + $0x28] sm:$0xff]
    %v128 = vld [vmem:[#allocation5 + $0x30] sm:$0xff]
    %v129 = vld [vmem:[#allocation5 + $0x38] sm:$0xff]
    %v130 = vld [vmem:[#allocation7] sm:$0x3]
    %v132 = vperm.slane %v130, 0
    %v133 = vperm.slane %v130, 1
    %vm136 = vcmask 261120
    %v138 = vsel %vm136, %v119, 0
    %v141 = vsel %vm136, %v120, 0
    %v144 = vsel %vm136, %v121, 0
    %146 = vmatpush.msra.mxu0 0.0
    %147 = vmatpush.msra.mxu0 0.0
    %148 = vmatpush.msra.mxu0 0.0
    %149 = vmatpush.msra.mxu0 0.0
    %150 = vmatpush.msra.mxu0 0.0
    %151 = vmatpush.msra.mxu0 0.0
    %152 = vmatpush.msra.mxu0 0.0
    %153 = vmatpush.msra.mxu0 0.0
    %154 = vmatpush.msra.mxu0 0.0
    %155 = vmatpush.msra.mxu0 0.0
    %156 = vmatpush.msra.mxu0 0.0
    %157 = vmatpush.msra.mxu0 0.0
    %158 = vmatpush.msra.mxu0 %v128
    %159 = vmatpush.msra.mxu0 %v126
    %160 = vmatpush.msra.mxu0 %v124
    %161 = vmatpush.msra.mxu0 %v122
    %162 = vmatmul.f32.gmra.mxu0 %v138
    %v163 = vpop.f32.mrf.mxu0
    %v164 = vadd.f32 %v132, %v163
    %165 = vmatmul.f32.gmra.mxu0 %v141
    %v166 = vpop.f32.mrf.mxu0
    %v167 = vadd.f32 %v132, %v166
    %168 = vmatmul.f32.gmra.mxu0 %v144
    %v169 = vpop.f32.mrf.mxu0
    %v170 = vadd.f32 %v132, %v169
    %171 = vdwg.mxu0
    %172 = vmatpush.msra.mxu0 0.0
    %173 = vmatpush.msra.mxu0 0.0
    %174 = vmatpush.msra.mxu0 0.0
    %175 = vmatpush.msra.mxu0 0.0
    %176 = vmatpush.msra.mxu0 0.0
    %177 = vmatpush.msra.mxu0 0.0
    %178 = vmatpush.msra.mxu0 0.0
    %179 = vmatpush.msra.mxu0 0.0
    %180 = vmatpush.msra.mxu0 0.0
    %181 = vmatpush.msra.mxu0 0.0
    %182 = vmatpush.msra.mxu0 0.0
    %183 = vmatpush.msra.mxu0 0.0
    %184 = vmatpush.msra.mxu0 %v129
    %185 = vmatpush.msra.mxu0 %v127
    %186 = vmatpush.msra.mxu0 %v125
    %187 = vmatpush.msra.mxu0 %v123
    %188 = vmatmul.f32.gmra.mxu0 %v138
    %v189 = vpop.f32.mrf.mxu0
    %v190 = vadd.f32 %v133, %v189
    %191 = vmatmul.f32.gmra.mxu0 %v141
    %v192 = vpop.f32.mrf.mxu0
    %v193 = vadd.f32 %v133, %v192
    %194 = vmatmul.f32.gmra.mxu0 %v144
    %v195 = vpop.f32.mrf.mxu0
    %v196 = vadd.f32 %v133, %v195
    %197 = vdwg.mxu0
    %v198 = vmax.f32 %v190, 0.0
    %v199 = vmax.f32 %v193, 0.0
    %v200 = vmax.f32 %v196, 0.0
    %201 = vmax.xlane.f32.xlu0 %v164
    %v202 = vpop.xlane.xlu0 %201
    %203 = vmax.xlane.f32.xlu0 %v167
    %v204 = vpop.xlane.xlu0 %203
    %205 = vmax.xlane.f32.xlu0 %v170
    %v206 = vpop.xlane.xlu0 %205
    %v207 = vsub.f32 %v164, %v202
    %v208 = vsub.f32 %v167, %v204
    %v209 = vsub.f32 %v170, %v206
    %v210 = vmul.f32 %v207, 1.442695
    %v211 = vpow.pop %v210
    %v212 = vmul.f32 %v208, 1.442695
    %v213 = vpow.pop %v212
    %v214 = vmul.f32 %v209, 1.442695
    %v215 = vpow.pop %v214
    %216 = vadd.xlane.f32.xlu0 %v211
    %v217 = vpop.xlane.xlu0 %216
    %218 = vadd.xlane.f32.xlu0 %v213
    %v219 = vpop.xlane.xlu0 %218
    %220 = vadd.xlane.f32.xlu0 %v215
    %v221 = vpop.xlane.xlu0 %220
    %v222 = vrcp.pop %v217
    %v223 = vrcp.pop %v219
    %v224 = vrcp.pop %v221
    %v225 = vmul.f32 %v211, %v222
    %v226 = vmul.f32 %v213, %v223
    %v227 = vmul.f32 %v215, %v224
    %v228 = vld [vmem:[#allocation10] sm:$0xff]
    %v229 = vld [vmem:[#allocation10 + $0x8] sm:$0xff]
    %v230 = vld [vmem:[#allocation10 + $0x10] sm:$0xff]
    %v231 = vld [vmem:[#allocation10 + $0x18] sm:$0xff]
    %v232 = vld [vmem:[#allocation10 + $0x20] sm:$0xff]
    %v233 = vld [vmem:[#allocation10 + $0x28] sm:$0xff]
    %v234 = vld [vmem:[#allocation10 + $0x30] sm:$0xff]
    %v235 = vld [vmem:[#allocation10 + $0x38] sm:$0xff]
    %v236 = vld [vmem:[#allocation10 + $0x40] sm:$0xff]
    %v237 = vld [vmem:[#allocation10 + $0x48] sm:$0xff]
    %v238 = vld [vmem:[#allocation10 + $0x50] sm:$0xff]
    %v239 = vld [vmem:[#allocation10 + $0x58] sm:$0xff]
    %v240 = vld [vmem:[#allocation10 + $0x60] sm:$0xff]
    %v241 = vld [vmem:[#allocation10 + $0x68] sm:$0xff]
    %v242 = vld [vmem:[#allocation10 + $0x70] sm:$0xff]
    %v243 = vld [vmem:[#allocation10 + $0x78] sm:$0xff]
    %244 = vmatpush.msra.mxu0 %v243
    %245 = vmatpush.msra.mxu0 %v242
    %246 = vmatpush.msra.mxu0 %v241
    %247 = vmatpush.msra.mxu0 %v240
    %248 = vmatpush.msra.mxu0 %v239
    %249 = vmatpush.msra.mxu0 %v238
    %250 = vmatpush.msra.mxu0 %v237
    %251 = vmatpush.msra.mxu0 %v236
    %252 = vmatpush.msra.mxu0 %v235
    %253 = vmatpush.msra.mxu0 %v234
    %254 = vmatpush.msra.mxu0 %v233
    %255 = vmatpush.msra.mxu0 %v232
    %256 = vmatpush.msra.mxu0 %v231
    %257 = vmatpush.msra.mxu0 %v230
    %258 = vmatpush.msra.mxu0 %v229
    %259 = vmatpush.msra.mxu0 %v228
    %260 = vmatmul.f32.gmra.mxu0 %v225
    %v261 = vpop.f32.mrf.mxu0
    %v262 = vadd.f32 0.0, %v261
    %263 = vmatmul.f32.gmra.mxu0 %v226
    %v264 = vpop.f32.mrf.mxu0
    %v265 = vadd.f32 0.0, %v264
    %266 = vmatmul.f32.gmra.mxu0 %v227
    %v267 = vpop.f32.mrf.mxu0
    %v268 = vadd.f32 0.0, %v267
    %269 = vdwg.mxu0
    %v270 = vld [vmem:[#allocation8] sm:$0xff]
    %v271 = vld [vmem:[#allocation8 + $0x8] sm:$0xff]
    %v272 = vld [vmem:[#allocation8 + $0x10] sm:$0xff]
    %v273 = vld [vmem:[#allocation8 + $0x18] sm:$0xff]
    %v274 = vld [vmem:[#allocation8 + $0x20] sm:$0xff]
    %v275 = vld [vmem:[#allocation8 + $0x28] sm:$0xff]
    %v276 = vld [vmem:[#allocation8 + $0x30] sm:$0xff]
    %v277 = vld [vmem:[#allocation8 + $0x38] sm:$0xff]
    %v278 = vld [vmem:[#allocation8 + $0x40] sm:$0xff]
    %v279 = vld [vmem:[#allocation8 + $0x48] sm:$0xff]
    %v280 = vld [vmem:[#allocation8 + $0x50] sm:$0xff]
    %v281 = vld [vmem:[#allocation8 + $0x58] sm:$0xff]
    %v282 = vld [vmem:[#allocation8 + $0x60] sm:$0xff]
    %v283 = vld [vmem:[#allocation8 + $0x68] sm:$0xff]
    %v284 = vld [vmem:[#allocation8 + $0x70] sm:$0xff]
    %v285 = vld [vmem:[#allocation8 + $0x78] sm:$0xff]
    %v286 = vld [vmem:[%s4] sm:$0x1]
    %v288 = vperm.slane %v286, 0
    %290 = vmatpush.msra.mxu0 %v285
    %291 = vmatpush.msra.mxu0 %v284
    %292 = vmatpush.msra.mxu0 %v283
    %293 = vmatpush.msra.mxu0 %v282
    %294 = vmatpush.msra.mxu0 %v281
    %295 = vmatpush.msra.mxu0 %v280
    %296 = vmatpush.msra.mxu0 %v279
    %297 = vmatpush.msra.mxu0 %v278
    %298 = vmatpush.msra.mxu0 %v277
    %299 = vmatpush.msra.mxu0 %v276
    %300 = vmatpush.msra.mxu0 %v275
    %301 = vmatpush.msra.mxu0 %v274
    %302 = vmatpush.msra.mxu0 %v273
    %303 = vmatpush.msra.mxu0 %v272
    %304 = vmatpush.msra.mxu0 %v271
    %305 = vmatpush.msra.mxu0 %v270
    %306 = vmatmul.f32.gmra.mxu0 %v198
    %v307 = vpop.f32.mrf.mxu0
    %v308 = vadd.f32 %v288, %v307
    %309 = vmatmul.f32.gmra.mxu0 %v199
    %v310 = vpop.f32.mrf.mxu0
    %v311 = vadd.f32 %v288, %v310
    %312 = vmatmul.f32.gmra.mxu0 %v200
    %v313 = vpop.f32.mrf.mxu0
    %v314 = vadd.f32 %v288, %v313
    %315 = vdwg.mxu0
    %v316 = vmax.f32 %v308, 0.0
    %v317 = vmax.f32 %v311, 0.0
    %v318 = vmax.f32 %v314, 0.0
    %v319 = vmul.f32 %v262, %v316
    %v320 = vmul.f32 %v265, %v317
    %v321 = vmul.f32 %v268, %v318
    %v322 = vld [vmem:[#allocation11] sm:$0xff]
    %v323 = vld [vmem:[#allocation11 + $0x8] sm:$0xff]
    %v324 = vld [vmem:[#allocation11 + $0x10] sm:$0xff]
    %v325 = vld [vmem:[#allocation11 + $0x18] sm:$0xff]
    %v326 = vld [vmem:[#allocation11 + $0x20] sm:$0xff]
    %v327 = vld [vmem:[#allocation11 + $0x28] sm:$0xff]
    %v328 = vld [vmem:[#allocation11 + $0x30] sm:$0xff]
    %v329 = vld [vmem:[#allocation11 + $0x38] sm:$0xff]
    %v330 = vld [vmem:[#allocation11 + $0x40] sm:$0xff]
    %v331 = vld [vmem:[#allocation11 + $0x48] sm:$0xff]
    %v332 = vld [vmem:[#allocation11 + $0x50] sm:$0xff]
    %v333 = vld [vmem:[#allocation11 + $0x58] sm:$0xff]
    %v334 = vld [vmem:[#allocation11 + $0x60] sm:$0xff]
    %v335 = vld [vmem:[#allocation11 + $0x68] sm:$0xff]
    %v336 = vld [vmem:[#allocation11 + $0x70] sm:$0xff]
    %v337 = vld [vmem:[#allocation11 + $0x78] sm:$0xff]
    %338 = vmatpush.msra.mxu0 %v337
    %339 = vmatpush.msra.mxu0 %v336
    %340 = vmatpush.msra.mxu0 %v335
    %341 = vmatpush.msra.mxu0 %v334
    %342 = vmatpush.msra.mxu0 %v333
    %343 = vmatpush.msra.mxu0 %v332
    %344 = vmatpush.msra.mxu0 %v331
    %345 = vmatpush.msra.mxu0 %v330
    %346 = vmatpush.msra.mxu0 %v329
    %347 = vmatpush.msra.mxu0 %v328
    %348 = vmatpush.msra.mxu0 %v327
    %349 = vmatpush.msra.mxu0 %v326
    %350 = vmatpush.msra.mxu0 %v325
    %351 = vmatpush.msra.mxu0 %v324
    %352 = vmatpush.msra.mxu0 %v323
    %353 = vmatpush.msra.mxu0 %v322
    %354 = vmatmul.f32.gmra.mxu0 %v319
    %v355 = vpop.f32.mrf.mxu0
    %v356 = vadd.f32 0.0, %v355
    %357 = vmatmul.f32.gmra.mxu0 %v320
    %v358 = vpop.f32.mrf.mxu0
    %v359 = vadd.f32 0.0, %v358
    %360 = vmatmul.f32.gmra.mxu0 %v321
    %v361 = vpop.f32.mrf.mxu0
    %v362 = vadd.f32 0.0, %v361
    %363 = vdwg.mxu0
    %364 = vst [vmem:[#allocation13] sm:$0xff] %v356
    %365 = vst [vmem:[#allocation13 + $0x8] sm:$0xff] %v359
    %366 = vst [vmem:[#allocation13 + $0x10] sm:$0xff] %v362
    // Predicated region
    $region54: #{tpu_custom_call.1} parent=1 // pred_check
      _
    $region55: #{tpu_custom_call.1} parent=1 // pred_check_branch
      %368 = sbr.rel (0) target = $region57
    $region56: #{tpu_custom_call.1} parent=1 // pred_region
      %370 = vsyncadd [#allocation4], 0
      %s371 = sshll.u32 [#allocation13], 4
      %s372 = int_to_ptr.vmem [resolvable:$true] %s371
      %s373 = sshll.u32 %s7, 4
      %s374 = int_to_ptr.hbm [resolvable:$true] %s373
      %379 = dma.vmem_to_hbm [thread:$0]  %s372, 384, %s374, [#allocation4], 128, 128, 8
    $region57: #{tpu_custom_call.1} parent=1 // pred_fallthru
      _
    // Predicated region
    $region58: #{tpu_custom_call.1} parent=1 // pred_check
      _
    $region59: #{tpu_custom_call.1} parent=1 // pred_check_branch
      %381 = sbr.rel (0) target = $region61
    $region60: #{tpu_custom_call.1} parent=1 // pred_region
      %383 = dma.done [#allocation4], 384
    $region61: #{tpu_custom_call.1} parent=1 // pred_fallthru
      _
    %384 = vsyncpa [#allocation3], 1
    %385 = vsyncpa [#allocation6], 1
    %386 = vsyncpa [#allocation9], 1
    %387 = vsyncpa [#allocation12], 1
    %388 = vsyncpa [#allocation4], 1

</llo_original>
